<compile_context>
chip_gen: v7x
topology: tpu7x:2x2x1
jax: 0.10.0
libtpu: 0.0.40
codegen_flags: <defaults>
</compile_context>

<pallas_src>
import functools

import numpy as np
import jax
import jax.numpy as jnp
from jax.experimental import pallas as pl
from jax.experimental.pallas import tpu as pltpu


# ----------------------------- helpers --------------------------------------

def _round_up(n, m):
    return -(-n // m) * m


def _relu(a):
    return jnp.maximum(a, 0.0)


def _vmem_budget_bytes():
    """~60% of physical VMEM, capped at 96 MiB (v5e/v6e: ~76 MiB, v7x: ~38 MiB)."""
    cap = None
    try:
        cap = getattr(pltpu.get_tpu_info(), "vmem_capacity_bytes", None)
    except Exception:
        cap = None
    if not cap:
        cap = 64 * 1024 * 1024          # conservative (v7x-sized) fallback
    return min(int(cap * 0.6), 96 * 1024 * 1024)


def _vmem_estimate_bytes(b_tile, dims_pad, w_itemsize):
    """Rough per-step VMEM need (f32 activations, dtype-sized weights)."""
    # x tile + output row, both double-buffered by the pipeline.
    io = 2 * b_tile * dims_pad[0] * 4 + 2 * 8 * _round_up(b_tile, 128) * 4
    # weights / biases (double-buffered by the default pipeline).
    weights = 2 * sum(dims_pad[i] * dims_pad[i + 1] * w_itemsize + 8 * dims_pad[i + 1] * 4
                      for i in range(len(dims_pad) - 1))
    weights += 2 * 8 * dims_pad[-1] * w_itemsize            # final weight row
    # intermediate activations (f32 accumulators through the layer chain).
    inter = 4 * b_tile * sum(dims_pad[1:]) + 4 * _round_up(b_tile, 128)
    return io + weights + inter


def _pad2d(a, rows, cols):
    a = jnp.asarray(a, jnp.float32)
    r, c = a.shape
    if r == rows and c == cols:
        return a
    return jnp.pad(a, ((0, rows - r), (0, cols - c)))


# ----------------------------- kernel ---------------------------------------

def _fused_mlp_kernel(*refs, n_hidden, compute_dtype, activation):
    """refs = (x, W_1, b_1, ..., W_n, b_n, w_out_row, b_out_smem, out).

    Hidden layers: MXU matmul (f32 accumulate) + bias + activation.
    Output layer (Dout=1): VPU elementwise mul + XLU row-reduce, stored as a
    lane-dense (1, 1, b_tile) row.
    """
    x_ref = refs[0]
    o_ref = refs[-1]
    wb = refs[1:-1]

    h = x_ref[...]
    for li in range(n_hidden):
        w = wb[2 * li][...]                 # (Din_pad, Dout_pad), compute_dtype
        b = wb[2 * li + 1][...]             # (1, Dout_pad), f32
        acc = jnp.dot(h.astype(compute_dtype), w,
                      preferred_element_type=jnp.float32)
        acc = activation(acc + b)           # bias + activation on f32 accumulator
        h = acc if compute_dtype == jnp.float32 else acc.astype(compute_dtype)

    w_row = wb[-2][...]                     # (1, D_last_pad)
    b_out = wb[-1][0]                       # scalar bias from SMEM
    y = jnp.sum(h.astype(jnp.float32) * w_row.astype(jnp.float32), axis=-1)
    y = y + b_out                           # (b_tile,), batch along lanes
    o_ref[...] = y.reshape(o_ref.shape).astype(o_ref.dtype)


# ----------------------------- wrapper --------------------------------------

def multiple_regression_forward(params, x, *, max_batch_tile=2048,
                                compute_dtype=jnp.float32, activation=_relu):
    """Fused forward: activation(layer_i(...)) chain -> layer_out, shape (B, 1).

    `params` is a list of (W, b) with W shaped (in, out); the last entry is the
    output layer with out == 1.
    """
    B, num_features = x.shape
    n_hidden = len(params) - 1
    assert n_hidden >= 1, "need at least one hidden layer"

    hidden_dims = [params[i][0].shape[1] for i in range(n_hidden)]
    dims = [num_features] + hidden_dims
    dims_pad = [_round_up(d, 128) for d in dims]       # lane / MXU alignment
    f_pad = dims_pad[0]

    # ---- batch tile selection ----------------------------------------------
    budget = _vmem_budget_bytes()
    w_itemsize = np.dtype(compute_dtype).itemsize
    b_tile = min(max_batch_tile, _round_up(max(B, 1), 8))
    if B >= 128:
        b_tile = max(128, (b_tile // 128) * 128)       # lane-dense output rows
    while b_tile > 128 and _vmem_estimate_bytes(b_tile, dims_pad, w_itemsize) > budget:
        b_tile = max(128, _round_up(b_tile // 2, 128))
    if pl.cdiv(B, b_tile) == 1 and B > 256:
        # Ensure >=2 grid steps so v7x's two TensorCores both get work.
        b_tile = _round_up(pl.cdiv(B, 2), 128)

    padded_b = _round_up(B, b_tile)
    num_tiles = padded_b // b_tile

    # ---- pad x (batch + feature dims) in a single pass ----------------------
    if padded_b != B or f_pad != num_features:
        x_in = jnp.pad(x, ((0, padded_b - B), (0, f_pad - num_features)))
    else:
        x_in = x

    # ---- build args / specs: x tiled over batch, params fully resident ------
    args = [x_in]
    in_specs = [pl.BlockSpec((b_tile, f_pad), lambda i: (i, 0))]
    for li in range(n_hidden):
        w, b = params[li]
        din_p, dout_p = dims_pad[li], dims_pad[li + 1]
        args.append(_pad2d(w, din_p, dout_p).astype(compute_dtype))
        args.append(_pad2d(jnp.reshape(b, (1, -1)), 1, dout_p))      # bias stays f32
        in_specs.append(pl.BlockSpec((din_p, dout_p), lambda i: (0, 0)))
        in_specs.append(pl.BlockSpec((1, dout_p), lambda i: (0, 0)))

    w_out, b_out = params[-1]                        # (d_last, 1), bias scalar
    d_last_p = dims_pad[-1]
    w_row = _pad2d(jnp.reshape(w_out, (-1, 1)).T, 1, d_last_p).astype(compute_dtype)
    args.append(w_row)
    in_specs.append(pl.BlockSpec((1, d_last_p), lambda i: (0, 0)))
    args.append(jnp.reshape(b_out, (1,)).astype(jnp.float32))        # SMEM scalar
    in_specs.append(pl.BlockSpec(memory_space=pltpu.MemorySpace.SMEM))

    # ---- cost estimate (scheduling hint only) --------------------------------
    flops = 2 * padded_b * sum(dims_pad[i] * dims_pad[i + 1] for i in range(n_hidden))
    flops += 2 * padded_b * dims_pad[-1]
    bytes_accessed = int(x_in.size) * x_in.dtype.itemsize
    bytes_accessed += sum(int(a.size) * a.dtype.itemsize for a in args[1:])
    bytes_accessed += padded_b * 4
    cost = pl.CostEstimate(flops=int(flops), transcendentals=0,
                           bytes_accessed=int(bytes_accessed))

    kernel = functools.partial(_fused_mlp_kernel, n_hidden=n_hidden,
                               compute_dtype=compute_dtype, activation=activation)

    out = pl.pallas_call(
        kernel,
        out_shape=jax.ShapeDtypeStruct((num_tiles, 1, b_tile), x.dtype),
        grid=(num_tiles,),
        in_specs=in_specs,
        out_specs=pl.BlockSpec((1, 1, b_tile), lambda i: (i, 0, 0)),
        compiler_params=pltpu.CompilerParams(
            dimension_semantics=("parallel",),
            vmem_limit_bytes=budget,
        ),
        cost_estimate=cost,
    )(*args)

    # (num_tiles, 1, b_tile) rows -> (padded_b, 1) column, drop padded rows.
    return out.reshape(padded_b, 1)[:B]


# ----------------------------- init / reference -----------------------------

def init_mlp_params(key, num_features, layer_out_neurons):
    """PyTorch-like nn.Linear init U(-1/sqrt(fan_in), +1/sqrt(fan_in)).

    Weights stored as (in, out) (pre-transposed vs PyTorch's (out, in))."""
    params = []
    in_dim = num_features
    dims = list(layer_out_neurons) + [1]             # final layer_out -> 1
    for out_dim in dims:
        key, kw, kb = jax.random.split(key, 3)
        bound = 1.0 / float(np.sqrt(in_dim))
        w = jax.random.uniform(kw, (in_dim, out_dim), jnp.float32, -bound, bound)
        b = jax.random.uniform(kb, (1, out_dim), jnp.float32, -bound, bound)
        params.append((w, b))
        in_dim = out_dim
    return params


def reference_forward(params, x):
    h = x
    for w, b in params[:-1]:
        h = jnp.maximum(h @ w + jnp.reshape(b, (1, -1)), 0.0)
    w, b = params[-1]
    return h @ w + jnp.reshape(b, (1, -1))


# ----------------------------- demo / check ----------------------------------

if __name__ == "__main__":
    key = jax.random.PRNGKey(0)
    num_features = 32
    layer_out_neurons = [64, 32]                     # two hidden layers

    key, kx, kp = jax.random.split(key, 3)
    params = init_mlp_params(kp, num_features, layer_out_neurons)

    # Small batch (single tile).
    x_small = jax.random.normal(kx, (8, num_features), jnp.float32)
    out_small = jax.block_until_ready(multiple_regression_forward(params, x_small))
    ref_small = reference_forward(params, x_small)
    assert out_small.shape == (8, 1), out_small.shape
    assert jnp.allclose(out_small, ref_small, atol=1e-5, rtol=1e-5), "small-batch mismatch"

    # Batch that is not a tile multiple (multi-tile + batch-padding path).
    key, kx2 = jax.random.split(key)
    x_big = jax.random.normal(kx2, (200, num_features), jnp.float32)
    out_big = jax.block_until_ready(multiple_regression_forward(params, x_big))
    ref_big = reference_forward(params, x_big)
    assert out_big.shape == (200, 1), out_big.shape
    assert jnp.allclose(out_big, ref_big, atol=1e-5, rtol=1e-5), "big-batch mismatch"

    # bf16 MXU path (v6e/v7x native); f32 accumulation keeps the error small.
    out_bf16 = jax.block_until_ready(
        multiple_regression_forward(params, x_big, compute_dtype=jnp.bfloat16))
    assert jnp.allclose(out_bf16, ref_big, atol=1e-1, rtol=1e-1), "bf16 path mismatch"

    print("KERNEL_OK")
</pallas_src>

<mosaic_0001>
module attributes {stable_mosaic.version = 11 : i64} {
  func.func @_fused_mlp_kernel(%arg0: i32, %arg1: memref<8x128xf32, #tpu.memory_space<vmem>>, %arg2: memref<128x128xf32, #tpu.memory_space<vmem>>, %arg3: memref<1x128xf32, #tpu.memory_space<vmem>>, %arg4: memref<128x128xf32, #tpu.memory_space<vmem>>, %arg5: memref<1x128xf32, #tpu.memory_space<vmem>>, %arg6: memref<1x128xf32, #tpu.memory_space<vmem>>, %arg7: memref<1xf32, #tpu.memory_space<smem>>, %arg8: memref<1x1x8xf32, #tpu.memory_space<vmem>>) attributes {dimension_semantics = [#tpu.dimension_semantics<parallel>], iteration_bounds = array<i64: 1>, scalar_prefetch = 0 : i64, scratch_operands = 0 : i64, tpu.core_type = #tpu.core_type<tc>, window_params = [{transform_indices = @transform_0, window_bounds = array<i64: 8, 128>}, {pipeline_mode = #tpu.pipeline_mode<synchronous>, transform_indices = @transform_1, window_bounds = array<i64: 128, 128>}, {pipeline_mode = #tpu.pipeline_mode<synchronous>, transform_indices = @transform_2, window_bounds = array<i64: 1, 128>}, {pipeline_mode = #tpu.pipeline_mode<synchronous>, transform_indices = @transform_3, window_bounds = array<i64: 128, 128>}, {pipeline_mode = #tpu.pipeline_mode<synchronous>, transform_indices = @transform_4, window_bounds = array<i64: 1, 128>}, {pipeline_mode = #tpu.pipeline_mode<synchronous>, transform_indices = @transform_5, window_bounds = array<i64: 1, 128>}, {transform_indices = @transform_6, window_bounds = array<i64: 1>}, {transform_indices = @transform_7, window_bounds = array<i64: 1, 1, 8>}]} {
    %c0 = arith.constant 0 : index
    %c0_0 = arith.constant 0 : index
    %0 = vector.load %arg1[%c0, %c0_0] : memref<8x128xf32, #tpu.memory_space<vmem>>, vector<8x128xf32>
    %c0_1 = arith.constant 0 : index
    %c0_2 = arith.constant 0 : index
    %1 = vector.load %arg2[%c0_1, %c0_2] : memref<128x128xf32, #tpu.memory_space<vmem>>, vector<128x128xf32>
    %c0_3 = arith.constant 0 : index
    %c0_4 = arith.constant 0 : index
    %2 = vector.load %arg3[%c0_3, %c0_4] : memref<1x128xf32, #tpu.memory_space<vmem>>, vector<1x128xf32>
    %cst = arith.constant dense<0.000000e+00> : vector<8x128xf32>
    %3 = tpu.matmul %0, %1, %cst {dimension_numbers = #tpu.dot_dimension_numbers<[1], [0], [0], [1], [0, 0, 1, 1], [], []>} : vector<8x128xf32>, vector<128x128xf32>, vector<8x128xf32> -> vector<8x128xf32>
    %4 = vector.broadcast %2 : vector<1x128xf32> to vector<8x128xf32>
    %5 = arith.addf %3, %4 : vector<8x128xf32>
    %cst_5 = arith.constant 0.000000e+00 : f32
    %6 = vector.broadcast %cst_5 : f32 to vector<8x128xf32>
    %7 = arith.maximumf %5, %6 : vector<8x128xf32>
    %c0_6 = arith.constant 0 : index
    %c0_7 = arith.constant 0 : index
    %8 = vector.load %arg4[%c0_6, %c0_7] : memref<128x128xf32, #tpu.memory_space<vmem>>, vector<128x128xf32>
    %c0_8 = arith.constant 0 : index
    %c0_9 = arith.constant 0 : index
    %9 = vector.load %arg5[%c0_8, %c0_9] : memref<1x128xf32, #tpu.memory_space<vmem>>, vector<1x128xf32>
    %cst_10 = arith.constant dense<0.000000e+00> : vector<8x128xf32>
    %10 = tpu.matmul %7, %8, %cst_10 {dimension_numbers = #tpu.dot_dimension_numbers<[1], [0], [0], [1], [0, 0, 1, 1], [], []>} : vector<8x128xf32>, vector<128x128xf32>, vector<8x128xf32> -> vector<8x128xf32>
    %11 = vector.broadcast %9 : vector<1x128xf32> to vector<8x128xf32>
    %12 = arith.addf %10, %11 : vector<8x128xf32>
    %cst_11 = arith.constant 0.000000e+00 : f32
    %13 = vector.broadcast %cst_11 : f32 to vector<8x128xf32>
    %14 = arith.maximumf %12, %13 : vector<8x128xf32>
    %c0_12 = arith.constant 0 : index
    %c0_13 = arith.constant 0 : index
    %15 = vector.load %arg6[%c0_12, %c0_13] : memref<1x128xf32, #tpu.memory_space<vmem>>, vector<1x128xf32>
    %c0_14 = arith.constant 0 : index
    %16 = memref.load %arg7[%c0_14] : memref<1xf32, #tpu.memory_space<smem>>
    %17 = vector.broadcast %15 : vector<1x128xf32> to vector<8x128xf32>
    %18 = arith.mulf %14, %17 : vector<8x128xf32>
    %cst_15 = arith.constant dense<0.000000e+00> : vector<8xf32>
    %19 = vector.multi_reduction <add>, %18, %cst_15 [1] : vector<8x128xf32> to vector<8xf32>
    %20 = vector.broadcast %16 : f32 to vector<8xf32>
    %21 = arith.addf %19, %20 : vector<8xf32>
    %22 = vector.shape_cast %21 : vector<8xf32> to vector<1x1x8xf32>
    %c0_16 = arith.constant 0 : index
    %c0_17 = arith.constant 0 : index
    %c0_18 = arith.constant 0 : index
    %23 = vector.load %arg8[%c0_16, %c0_17, %c0_18] : memref<1x1x8xf32, #tpu.memory_space<vmem>>, vector<1x1x8xf32>
    tpu.vector_store %arg8[%c0_16, %c0_17, %c0_18], %22 {strides = array<i32>} : memref<1x1x8xf32, #tpu.memory_space<vmem>>, vector<1x1x8xf32>,
    return
  }
  func.func @transform_0(%arg0: i32) -> (i32, i32) {
    %c0_i32 = arith.constant 0 : i32
    %c0_i32_0 = arith.constant 0 : i32
    return %arg0, %c0_i32 : i32, i32
  }
  func.func @transform_1(%arg0: i32) -> (i32, i32) {
    %c0_i32 = arith.constant 0 : i32
    %c0_i32_0 = arith.constant 0 : i32
    %c0_i32_1 = arith.constant 0 : i32
    return %c0_i32, %c0_i32_0 : i32, i32
  }
  func.func @transform_2(%arg0: i32) -> (i32, i32) {
    %c0_i32 = arith.constant 0 : i32
    %c0_i32_0 = arith.constant 0 : i32
    %c0_i32_1 = arith.constant 0 : i32
    return %c0_i32, %c0_i32_0 : i32, i32
  }
  func.func @transform_3(%arg0: i32) -> (i32, i32) {
    %c0_i32 = arith.constant 0 : i32
    %c0_i32_0 = arith.constant 0 : i32
    %c0_i32_1 = arith.constant 0 : i32
    return %c0_i32, %c0_i32_0 : i32, i32
  }
  func.func @transform_4(%arg0: i32) -> (i32, i32) {
    %c0_i32 = arith.constant 0 : i32
    %c0_i32_0 = arith.constant 0 : i32
    %c0_i32_1 = arith.constant 0 : i32
    return %c0_i32, %c0_i32_0 : i32, i32
  }
  func.func @transform_5(%arg0: i32) -> (i32, i32) {
    %c0_i32 = arith.constant 0 : i32
    %c0_i32_0 = arith.constant 0 : i32
    %c0_i32_1 = arith.constant 0 : i32
    return %c0_i32, %c0_i32_0 : i32, i32
  }
  func.func @transform_6(%arg0: i32) -> i32 {
    %c0_i32 = arith.constant 0 : i32
    %c0_i32_0 = arith.constant 0 : i32
    return %c0_i32 : i32
  }
  func.func @transform_7(%arg0: i32) -> (i32, i32, i32) {
    %c0_i32 = arith.constant 0 : i32
    %c0_i32_0 = arith.constant 0 : i32
    %c0_i32_1 = arith.constant 0 : i32
    return %arg0, %c0_i32, %c0_i32_0 : i32, i32, i32
  }
}

</mosaic_0001>

<llo_original>
// kernel: tpu_custom_call.1
$region0: #{tpu_custom_call.1}
  #allocation0 [shape = 'u32[]', space=smem, size = 0x4, offset = 0x4, fixed_abs, tag = 'smem constant byte address 0x4 - core index']
  #allocation1 [shape = 'u32[144,128]{1,0:T(1,128)}', space=vmem, size = 0x12000, scoped, tag = 'internal scratch']
  #allocation2 [shape = 'f32[1]{0:T(128)S(6)}', space=smem, size = 0x200, scoped, tag = 'scoped memory for tpu_custom_call.1']
  %s0 = inlined_call_operand.hbm [shape: f32[8,128], index: 0, kind: input, shape index: {}]
  %s1 = inlined_call_operand.hbm [shape: f32[128,128], index: 1, kind: input, shape index: {}]
  %s2 = inlined_call_operand.vmem [shape: f32[1,128], index: 2, kind: input, shape index: {}]
  %s3 = inlined_call_operand.hbm [shape: f32[128,128], index: 3, kind: input, shape index: {}]
  %s4 = inlined_call_operand.vmem [shape: f32[1,128], index: 4, kind: input, shape index: {}]
  %s5 = inlined_call_operand.vmem [shape: f32[1,128], index: 5, kind: input, shape index: {}]
  %s6 = inlined_call_operand.<no memory space> [shape: f32[1], index: 6, kind: input, shape index: {}]
  %s7 = inlined_call_operand.hbm [shape: f32[1,1,8], index: 7, kind: output, shape index: {}]
  %s8 = sld [smem:[#allocation0]]
  $region50: #{tpu_custom_call.1} parent=0
    _
  %s10 = ssub.s32 1, %s8
  %s11 = scalar_select 0, %s10, %s8
  %12 = sst [smem:[#allocation2]] %s6
  $region1: #{tpu_custom_call.1} parent=0
    #allocation3 [shape = 'u8[4096]{0}', space=vmem, size = 0x1000, scoped, tag = 'input window, operand 0, single buffered']
    #allocation4 [shape = 's32[1]{0}', space=sflag, size = 0x4, scoped, tag = 'scoped memory for tpu_custom_call.1']
    #allocation5 [shape = 's32[1]{0}', space=sflag, size = 0x4, scoped, tag = 'scoped memory for tpu_custom_call.1']
    #allocation6 [shape = 'u8[65536]{0}', space=vmem, size = 0x10000, scoped, tag = 'input window, operand 1, single buffered']
    #allocation7 [shape = 's32[1]{0}', space=sflag, size = 0x4, scoped, tag = 'scoped memory for tpu_custom_call.1']
    #allocation8 [shape = 'u8[65536]{0}', space=vmem, size = 0x10000, scoped, tag = 'input window, operand 3, single buffered']
    #allocation9 [shape = 'u8[512]{0}', space=vmem, size = 0x400, scoped, tag = 'output window, operand 0, single buffered']
    %13 = vsyncpa [#allocation4], 0
    %14 = vsyncpa [#allocation7], 0
    %15 = vsyncpa [#allocation5], 0
    // Predicated region
    $region2: #{tpu_custom_call.1} parent=1 // pred_check
      _
    $region3: #{tpu_custom_call.1} parent=1 // pred_check_branch
      %17 = sbr.rel (0) target = $region5
    $region4: #{tpu_custom_call.1} parent=1 // pred_region
      %s19 = ssub.s32 128, 128
      %20 = vsyncadd [#allocation4], %s19
      %s22 = sshll.u32 [#allocation3], 4
      %s23 = int_to_ptr.vmem [resolvable:$true] %s22
      %25 = dma.hbm_to_vmem [thread:$0]  %s0, 128, %s23, [#allocation4]
    $region5: #{tpu_custom_call.1} parent=1 // pred_fallthru
      _
    // Predicated region
    $region6: #{tpu_custom_call.1} parent=1 // pred_check
      _
    $region7: #{tpu_custom_call.1} parent=1 // pred_check_branch
      %27 = sbr.rel (0) target = $region9
    $region8: #{tpu_custom_call.1} parent=1 // pred_region
      %s29 = ssub.s32 2048, 2048
      %30 = vsyncadd [#allocation7], %s29
      %s31 = sshll.u32 [#allocation6], 4
      %s32 = int_to_ptr.vmem [resolvable:$true] %s31
      %37 = dma.hbm_to_vmem [thread:$0]  %s1, 2048, %s32, [#allocation7], 128, 128, 8
    $region9: #{tpu_custom_call.1} parent=1 // pred_fallthru
      _
    // Predicated region
    $region10: #{tpu_custom_call.1} parent=1 // pred_check
      _
    $region11: #{tpu_custom_call.1} parent=1 // pred_check_branch
      %39 = sbr.rel (0) target = $region13
    $region12: #{tpu_custom_call.1} parent=1 // pred_region
      _
    $region13: #{tpu_custom_call.1} parent=1 // pred_fallthru
      _
    // Predicated region
    $region14: #{tpu_custom_call.1} parent=1 // pred_check
      _
    $region15: #{tpu_custom_call.1} parent=1 // pred_check_branch
      %41 = sbr.rel (0) target = $region17
    $region16: #{tpu_custom_call.1} parent=1 // pred_region
      %s43 = ssub.s32 2048, 2048
      %44 = vsyncadd [#allocation7], %s43
      %s45 = sshll.u32 [#allocation8], 4
      %s46 = int_to_ptr.vmem [resolvable:$true] %s45
      %51 = dma.hbm_to_vmem [thread:$0]  %s3, 2048, %s46, [#allocation7], 128, 128, 8
    $region17: #{tpu_custom_call.1} parent=1 // pred_fallthru
      _
    // Predicated region
    $region18: #{tpu_custom_call.1} parent=1 // pred_check
      _
    $region19: #{tpu_custom_call.1} parent=1 // pred_check_branch
      %53 = sbr.rel (0) target = $region21
    $region20: #{tpu_custom_call.1} parent=1 // pred_region
      _
    $region21: #{tpu_custom_call.1} parent=1 // pred_fallthru
      _
    // Predicated region
    $region22: #{tpu_custom_call.1} parent=1 // pred_check
      _
    $region23: #{tpu_custom_call.1} parent=1 // pred_check_branch
      %55 = sbr.rel (0) target = $region25
    $region24: #{tpu_custom_call.1} parent=1 // pred_region
      _
    $region25: #{tpu_custom_call.1} parent=1 // pred_fallthru
      _
    // Predicated region
    $region26: #{tpu_custom_call.1} parent=1 // pred_check
      _
    $region27: #{tpu_custom_call.1} parent=1 // pred_check_branch
      %57 = sbr.rel (0) target = $region29
    $region28: #{tpu_custom_call.1} parent=1 // pred_region
      _
    $region29: #{tpu_custom_call.1} parent=1 // pred_fallthru
      _
    // Predicated region
    $region30: #{tpu_custom_call.1} parent=1 // pred_check
      _
    $region31: #{tpu_custom_call.1} parent=1 // pred_check_branch
      %59 = sbr.rel (0) target = $region33
    $region32: #{tpu_custom_call.1} parent=1 // pred_region
      %60 = dma.done [#allocation4], 128
    $region33: #{tpu_custom_call.1} parent=1 // pred_fallthru
      _
    // Predicated region
    $region34: #{tpu_custom_call.1} parent=1 // pred_check
      _
    $region35: #{tpu_custom_call.1} parent=1 // pred_check_branch
      %62 = sbr.rel (0) target = $region37
    $region36: #{tpu_custom_call.1} parent=1 // pred_region
      %63 = dma.done [#allocation7], 2048
    $region37: #{tpu_custom_call.1} parent=1 // pred_fallthru
      _
    // Predicated region
    $region38: #{tpu_custom_call.1} parent=1 // pred_check
      _
    $region39: #{tpu_custom_call.1} parent=1 // pred_check_branch
      %65 = sbr.rel (0) target = $region41
    $region40: #{tpu_custom_call.1} parent=1 // pred_region
      %66 = dma.done [#allocation7], 2048
    $region41: #{tpu_custom_call.1} parent=1 // pred_fallthru
      _
    %v67 = vld [vmem:[#allocation3] sm:$0xff]
    %v68 = vld [vmem:[#allocation6] sm:$0xff]
    %v69 = vld [vmem:[#allocation6 + $0x8] sm:$0xff]
    %v70 = vld [vmem:[#allocation6 + $0x10] sm:$0xff]
    %v71 = vld [vmem:[#allocation6 + $0x18] sm:$0xff]
    %v72 = vld [vmem:[#allocation6 + $0x20] sm:$0xff]
    %v73 = vld [vmem:[#allocation6 + $0x28] sm:$0xff]
    %v74 = vld [vmem:[#allocation6 + $0x30] sm:$0xff]
    %v75 = vld [vmem:[#allocation6 + $0x38] sm:$0xff]
    %v76 = vld [vmem:[#allocation6 + $0x40] sm:$0xff]
    %v77 = vld [vmem:[#allocation6 + $0x48] sm:$0xff]
    %v78 = vld [vmem:[#allocation6 + $0x50] sm:$0xff]
    %v79 = vld [vmem:[#allocation6 + $0x58] sm:$0xff]
    %v80 = vld [vmem:[#allocation6 + $0x60] sm:$0xff]
    %v81 = vld [vmem:[#allocation6 + $0x68] sm:$0xff]
    %v82 = vld [vmem:[#allocation6 + $0x70] sm:$0xff]
    %v83 = vld [vmem:[#allocation6 + $0x78] sm:$0xff]
    %v84 = vld [vmem:[%s2] sm:$0x1]
    %v86 = vlaneseq
    %v87 = vshrl.u32 %v86, 7
    %v88 = vsub.s32 0, %v87
    %v89 = vrot.slane %v84, %v88
    %91 = vmatprep.subr.mxu0 0.0
    %92 = vmatpush1.msra.mxu0 %v68
    %93 = vmatprep.subr.mxu0 0.0
    %94 = vmatpush1.msra.mxu0 %v69
    %95 = vmatprep.subr.mxu0 0.0
    %96 = vmatpush1.msra.mxu0 %v70
    %97 = vmatprep.subr.mxu0 0.0
    %98 = vmatpush1.msra.mxu0 %v71
    %99 = vmatprep.subr.mxu0 0.0
    %100 = vmatpush1.msra.mxu0 %v72
    %101 = vmatprep.subr.mxu0 0.0
    %102 = vmatpush1.msra.mxu0 %v73
    %103 = vmatprep.subr.mxu0 0.0
    %104 = vmatpush1.msra.mxu0 %v74
    %105 = vmatprep.subr.mxu0 0.0
    %106 = vmatpush1.msra.mxu0 %v75
    %107 = vmatprep.subr.mxu0 0.0
    %108 = vmatpush1.msra.mxu0 %v76
    %109 = vmatprep.subr.mxu0 0.0
    %110 = vmatpush1.msra.mxu0 %v77
    %111 = vmatprep.subr.mxu0 0.0
    %112 = vmatpush1.msra.mxu0 %v78
    %113 = vmatprep.subr.mxu0 0.0
    %114 = vmatpush1.msra.mxu0 %v79
    %115 = vmatprep.subr.mxu0 0.0
    %116 = vmatpush1.msra.mxu0 %v80
    %117 = vmatprep.subr.mxu0 0.0
    %118 = vmatpush1.msra.mxu0 %v81
    %119 = vmatprep.subr.mxu0 0.0
    %120 = vmatpush1.msra.mxu0 %v82
    %121 = vmatprep.subr.mxu0 0.0
    %122 = vmatpush1.msra.mxu0 %v83
    %123 = vmatprep.subr.mxu0 0.0
    %124 = vmatpush1.msra.mxu0 0.0
    %125 = vmatprep.subr.mxu0 0.0
    %126 = vmatpush1.msra.mxu0 0.0
    %127 = vmatprep.subr.mxu0 0.0
    %128 = vmatpush1.msra.mxu0 0.0
    %129 = vmatprep.subr.mxu0 0.0
    %130 = vmatpush1.msra.mxu0 0.0
    %131 = vmatprep.subr.mxu0 0.0
    %132 = vmatpush1.msra.mxu0 0.0
    %133 = vmatprep.subr.mxu0 0.0
    %134 = vmatpush1.msra.mxu0 0.0
    %135 = vmatprep.subr.mxu0 0.0
    %136 = vmatpush1.msra.mxu0 0.0
    %137 = vmatprep.subr.mxu0 0.0
    %138 = vmatpush1.msra.mxu0 0.0
    %139 = vmatprep.subr.mxu0 0.0
    %140 = vmatpush1.msra.mxu0 0.0
    %141 = vmatprep.subr.mxu0 0.0
    %142 = vmatpush1.msra.mxu0 0.0
    %143 = vmatprep.subr.mxu0 0.0
    %144 = vmatpush1.msra.mxu0 0.0
    %145 = vmatprep.subr.mxu0 0.0
    %146 = vmatpush1.msra.mxu0 0.0
    %147 = vmatprep.subr.mxu0 0.0
    %148 = vmatpush1.msra.mxu0 0.0
    %149 = vmatprep.subr.mxu0 0.0
    %150 = vmatpush1.msra.mxu0 0.0
    %151 = vmatprep.subr.mxu0 0.0
    %152 = vmatpush1.msra.mxu0 0.0
    %153 = vmatprep.subr.mxu0 0.0
    %154 = vmatpush1.msra.mxu0 0.0
    %155 = vmatprep.mubr.f32.mxu0 0.0
    %156 = vmatmul.mubr.f32.gmra.mrb[0].mxu0 %v67
    %v157 = vpop.f32.mrb[0].mxu0
    %v158 = vadd.f32 %v89, %v157
    %v159 = vpop.f32.mrb[0].mxu0
    %160 = vdwg.mxu0
    %v161 = vmax.f32 %v158, 0.0
    %v162 = vld [vmem:[#allocation8] sm:$0xff]
    %v163 = vld [vmem:[#allocation8 + $0x8] sm:$0xff]
    %v164 = vld [vmem:[#allocation8 + $0x10] sm:$0xff]
    %v165 = vld [vmem:[#allocation8 + $0x18] sm:$0xff]
    %v166 = vld [vmem:[#allocation8 + $0x20] sm:$0xff]
    %v167 = vld [vmem:[#allocation8 + $0x28] sm:$0xff]
    %v168 = vld [vmem:[#allocation8 + $0x30] sm:$0xff]
    %v169 = vld [vmem:[#allocation8 + $0x38] sm:$0xff]
    %v170 = vld [vmem:[#allocation8 + $0x40] sm:$0xff]
    %v171 = vld [vmem:[#allocation8 + $0x48] sm:$0xff]
    %v172 = vld [vmem:[#allocation8 + $0x50] sm:$0xff]
    %v173 = vld [vmem:[#allocation8 + $0x58] sm:$0xff]
    %v174 = vld [vmem:[#allocation8 + $0x60] sm:$0xff]
    %v175 = vld [vmem:[#allocation8 + $0x68] sm:$0xff]
    %v176 = vld [vmem:[#allocation8 + $0x70] sm:$0xff]
    %v177 = vld [vmem:[#allocation8 + $0x78] sm:$0xff]
    %v178 = vld [vmem:[%s4] sm:$0x1]
    %v180 = vlaneseq
    %v181 = vshrl.u32 %v180, 7
    %v182 = vsub.s32 0, %v181
    %v183 = vrot.slane %v178, %v182
    %185 = vmatprep.subr.mxu0 0.0
    %186 = vmatpush1.msra.mxu0 %v162
    %187 = vmatprep.subr.mxu0 0.0
    %188 = vmatpush1.msra.mxu0 %v163
    %189 = vmatprep.subr.mxu0 0.0
    %190 = vmatpush1.msra.mxu0 %v164
    %191 = vmatprep.subr.mxu0 0.0
    %192 = vmatpush1.msra.mxu0 %v165
    %193 = vmatprep.subr.mxu0 0.0
    %194 = vmatpush1.msra.mxu0 %v166
    %195 = vmatprep.subr.mxu0 0.0
    %196 = vmatpush1.msra.mxu0 %v167
    %197 = vmatprep.subr.mxu0 0.0
    %198 = vmatpush1.msra.mxu0 %v168
    %199 = vmatprep.subr.mxu0 0.0
    %200 = vmatpush1.msra.mxu0 %v169
    %201 = vmatprep.subr.mxu0 0.0
    %202 = vmatpush1.msra.mxu0 %v170
    %203 = vmatprep.subr.mxu0 0.0
    %204 = vmatpush1.msra.mxu0 %v171
    %205 = vmatprep.subr.mxu0 0.0
    %206 = vmatpush1.msra.mxu0 %v172
    %207 = vmatprep.subr.mxu0 0.0
    %208 = vmatpush1.msra.mxu0 %v173
    %209 = vmatprep.subr.mxu0 0.0
    %210 = vmatpush1.msra.mxu0 %v174
    %211 = vmatprep.subr.mxu0 0.0
    %212 = vmatpush1.msra.mxu0 %v175
    %213 = vmatprep.subr.mxu0 0.0
    %214 = vmatpush1.msra.mxu0 %v176
    %215 = vmatprep.subr.mxu0 0.0
    %216 = vmatpush1.msra.mxu0 %v177
    %217 = vmatprep.subr.mxu0 0.0
    %218 = vmatpush1.msra.mxu0 0.0
    %219 = vmatprep.subr.mxu0 0.0
    %220 = vmatpush1.msra.mxu0 0.0
    %221 = vmatprep.subr.mxu0 0.0
    %222 = vmatpush1.msra.mxu0 0.0
    %223 = vmatprep.subr.mxu0 0.0
    %224 = vmatpush1.msra.mxu0 0.0
    %225 = vmatprep.subr.mxu0 0.0
    %226 = vmatpush1.msra.mxu0 0.0
    %227 = vmatprep.subr.mxu0 0.0
    %228 = vmatpush1.msra.mxu0 0.0
    %229 = vmatprep.subr.mxu0 0.0
    %230 = vmatpush1.msra.mxu0 0.0
    %231 = vmatprep.subr.mxu0 0.0
    %232 = vmatpush1.msra.mxu0 0.0
    %233 = vmatprep.subr.mxu0 0.0
    %234 = vmatpush1.msra.mxu0 0.0
    %235 = vmatprep.subr.mxu0 0.0
    %236 = vmatpush1.msra.mxu0 0.0
    %237 = vmatprep.subr.mxu0 0.0
    %238 = vmatpush1.msra.mxu0 0.0
    %239 = vmatprep.subr.mxu0 0.0
    %240 = vmatpush1.msra.mxu0 0.0
    %241 = vmatprep.subr.mxu0 0.0
    %242 = vmatpush1.msra.mxu0 0.0
    %243 = vmatprep.subr.mxu0 0.0
    %244 = vmatpush1.msra.mxu0 0.0
    %245 = vmatprep.subr.mxu0 0.0
    %246 = vmatpush1.msra.mxu0 0.0
    %247 = vmatprep.subr.mxu0 0.0
    %248 = vmatpush1.msra.mxu0 0.0
    %249 = vmatprep.mubr.f32.mxu0 0.0
    %250 = vmatmul.mubr.f32.gmra.mrb[0].mxu0 %v161
    %v251 = vpop.f32.mrb[0].mxu0
    %v252 = vadd.f32 %v183, %v251
    %v253 = vpop.f32.mrb[0].mxu0
    %254 = vdwg.mxu0
    %v255 = vmax.f32 %v252, 0.0
    %v256 = vld [vmem:[%s5] sm:$0x1]
    %s257 = sld [smem:[#allocation2]]
    %v259 = vlaneseq
    %v260 = vshrl.u32 %v259, 7
    %v261 = vsub.s32 0, %v260
    %v262 = vrot.slane %v256, %v261
    %v264 = vmul.f32 %v255, %v262
    %265 = vadd.xlane.f32.xlu0 %v264
    %v266 = vpop.xlane.xlu0 %265
    %v267 = vstv %s257
    %v268 = vadd.f32 %v266, %v267
    %v270 = vlaneseq
    %v271 = vand.u32 %v270, 127
    %v272 = vlaneseq
    %v273 = vshrl.u32 %v272, 7
    %v274 = vsub.s32 %v271, %v273
    %v275 = vrot.slane %v268, %v274
    %vm277 = vcmask 57344
    %278 = vst.msk [vmem:[#allocation9] sm:$0x1] %vm277, %v275
    // Predicated region
    $region42: #{tpu_custom_call.1} parent=1 // pred_check
      _
    $region43: #{tpu_custom_call.1} parent=1 // pred_check_branch
      %280 = sbr.rel (0) target = $region45
    $region44: #{tpu_custom_call.1} parent=1 // pred_region
      %s282 = ssub.s32 16, 16
      %283 = vsyncadd [#allocation5], %s282
      %s285 = sshll.u32 [#allocation9], 4
      %s286 = int_to_ptr.vmem [resolvable:$true] %s285
      %288 = dma.vmem_to_hbm [thread:$0]  %s286, 16, %s7, [#allocation5]
    $region45: #{tpu_custom_call.1} parent=1 // pred_fallthru
      _
    // Predicated region
    $region46: #{tpu_custom_call.1} parent=1 // pred_check
      _
    $region47: #{tpu_custom_call.1} parent=1 // pred_check_branch
      %290 = sbr.rel (0) target = $region49
    $region48: #{tpu_custom_call.1} parent=1 // pred_region
      %291 = dma.done [#allocation5], 16
    $region49: #{tpu_custom_call.1} parent=1 // pred_fallthru
      _
    %292 = vsyncpa [#allocation4], 1
    %293 = vsyncpa [#allocation7], 1
    %294 = vsyncpa [#allocation5], 1

</llo_original>
